<compile_context>
chip_gen: v6e
topology: v6e:2x2x1
jax: 0.10.0
libtpu: 0.0.40
codegen_flags: <defaults>
</compile_context>

<pallas_src>
import functools

import jax
import jax.numpy as jnp
from jax import lax
from jax.experimental import pallas as pl
from jax.experimental.pallas import tpu as pltpu


def _round_up(x, m):
    return ((x + m - 1) // m) * m


def _conv_rows_kernel(x_ref, w_ref, o_ref, *, th):
    # x_ref: (1, 1, H_t+2, (TW+2)*Cin)  column stripe, resident across row tiles
    # w_ref: (3, (TW+2)*Cin, TW*Cout)   banded per-row-tap weights, resident
    # o_ref: (1, TH, TW*Cout)           lane-dense output block
    r0 = pl.multiple_of(pl.program_id(2) * th, 8)
    acc = jnp.dot(x_ref[0, 0, pl.ds(r0, th), :], w_ref[0],
                  preferred_element_type=jnp.float32)
    acc = acc + jnp.dot(x_ref[0, 0, pl.ds(r0 + 1, th), :], w_ref[1],
                        preferred_element_type=jnp.float32)
    acc = acc + jnp.dot(x_ref[0, 0, pl.ds(r0 + 2, th), :], w_ref[2],
                        preferred_element_type=jnp.float32)
    o_ref[0] = acc.astype(o_ref.dtype)


def overlap_patch_embed(x_nchw, weight_oihw, *, tile_h=256, tile_w=16,
                        compute_dtype=None, out_dtype=None):
    """Forward pass of OverlapPatchEmbed.

    x_nchw:      (B, Cin, H, W)       -- PyTorch NCHW convention
    weight_oihw: (Cout, Cin, 3, 3)    -- PyTorch Conv2d weight layout (bias=False)
    compute_dtype: dtype fed to the MXU (e.g. jnp.bfloat16); f32 accumulation.
    out_dtype:   output dtype (bf16 halves the dominant HBM write stream).
    returns:     (B, H*W, Cout)
    """
    B, Cin, H, W = x_nchw.shape
    Cout, Cin_w, KH, KW = weight_oihw.shape
    assert (KH, KW) == (3, 3) and Cin_w == Cin
    if compute_dtype is None:
        compute_dtype = x_nchw.dtype
    if out_dtype is None:
        out_dtype = x_nchw.dtype

    # ---- tile sizes (TH rows x TW output columns per grid step) ----
    th = max(8, _round_up(min(tile_h, _round_up(H, 8)), 8))
    H_t = _round_up(H, th)
    w_full = _round_up(W, 8)
    tw = max(8, _round_up(min(tile_w, w_full), 8))
    # keep the output block's last dim (TW*Cout) a multiple of 128 so stores
    # are unmasked; if it can't be, fall back to a single full-width stripe.
    while (tw * Cout) % 128 != 0 and tw < w_full:
        tw += 8
    W_t = _round_up(W, tw)
    num_i, num_j = H_t // th, W_t // tw

    # ---- layout glue (XLA, input-sized only): NCHW -> NHWC, zero-pad by 1
    # for the conv plus tiling pad on the bottom/right, flatten (W, Cin) into
    # the lane axis so every DMA is lane-dense and contiguous. ----
    x_nhwc = jnp.transpose(x_nchw, (0, 2, 3, 1)).astype(compute_dtype)
    xpad = jnp.pad(x_nhwc, ((0, 0), (1, 1 + H_t - H), (1, 1 + W_t - W), (0, 0)))
    xrows = xpad.reshape(B, H_t + 2, (W_t + 2) * Cin)

    # Overlapping column stripes (static lane starts; (TW+2)/TW ~ 1.1x input
    # duplication -- negligible for the 3-channel input stream).
    kwl = (tw + 2) * Cin
    stripes = [xrows[:, :, j * tw * Cin: j * tw * Cin + kwl] for j in range(num_j)]
    x_str = jnp.stack(stripes, axis=1)            # (B, num_j, H_t+2, kwl)

    # ---- banded column weights: wband[kh, (wi,cin), (wo,cout)] =
    #      weight[cout, cin, kh, wi-wo] for 0 <= wi-wo <= 2, else 0. ----
    w_t = jnp.transpose(weight_oihw, (2, 3, 1, 0)).astype(jnp.float32)  # (KH,KW,Cin,Cout)
    eye = jnp.eye(tw, dtype=jnp.float32)
    shift = jnp.stack([jnp.pad(eye, ((kw, 2 - kw), (0, 0))) for kw in range(KW)])
    wband = jnp.einsum('kio,hkcd->hicod', shift, w_t)   # (KH, tw+2, Cin, tw, Cout)
    wband = wband.reshape(KH, kwl, tw * Cout).astype(compute_dtype)

    nw = tw * Cout
    out = pl.pallas_call(
        functools.partial(_conv_rows_kernel, th=th),
        out_shape=jax.ShapeDtypeStruct((B, H_t, W_t * Cout), out_dtype),
        grid_spec=pltpu.PrefetchScalarGridSpec(
            num_scalar_prefetch=0,
            grid=(B, num_j, num_i),                       # row axis innermost
            in_specs=[
                # column stripe: constant over the row axis -> one DMA / (b, j)
                pl.BlockSpec((1, 1, H_t + 2, kwl), lambda b, j, i: (b, j, 0, 0)),
                # banded weight: constant index_map -> VMEM-resident
                pl.BlockSpec((KH, kwl, nw), lambda b, j, i: (0, 0, 0)),
            ],
            out_specs=pl.BlockSpec((1, th, nw), lambda b, j, i: (b, i, j)),
        ),
        compiler_params=pltpu.CompilerParams(
            dimension_semantics=("parallel", "parallel", "arbitrary"),
        ),
    )(x_str, wband)

    # (B, H_t, W_t*Cout) -> (B, H*W, Cout): pure row-major reshapes + slices.
    out = out.reshape(B, H_t, W_t, Cout)[:, :H, :W, :].reshape(B, H * W, Cout)
    return out


if __name__ == "__main__":
    key = jax.random.PRNGKey(0)
    kx, kw = jax.random.split(key)

    # Shapes implied by the module defaults: in_c=3, embed_dim=48.
    B, Cin, H, W = 2, 3, 16, 16
    Cout = 48

    x = jax.random.normal(kx, (B, Cin, H, W), dtype=jnp.float32)

    # Deterministic Conv2d weight init (kaiming-uniform-like scale), bias=False.
    fan_in = Cin * 3 * 3
    bound = (1.0 / fan_in) ** 0.5
    weight = jax.random.uniform(
        kw, (Cout, Cin, 3, 3), dtype=jnp.float32, minval=-bound, maxval=bound
    )

    # Pure-JAX reference: conv2d (NCHW, pad=1) then 'b c h w -> b (h w) c'.
    ref = lax.conv_general_dilated(
        x, weight, window_strides=(1, 1), padding=((1, 1), (1, 1)),
        dimension_numbers=("NCHW", "OIHW", "NCHW"),
    )
    ref = jnp.transpose(ref, (0, 2, 3, 1)).reshape(B, H * W, Cout)

    # f32 path: module-exact semantics, tight tolerance.
    out_f32 = jax.block_until_ready(overlap_patch_embed(x, weight))
    assert out_f32.shape == (B, H * W, Cout)
    assert out_f32.dtype == x.dtype
    assert jnp.allclose(out_f32, ref, atol=1e-4, rtol=1e-4)

    # bf16 MXU feed (perf option on v6e/v7x; f32 accumulation, f32 output).
    out_bc = jax.block_until_ready(
        overlap_patch_embed(x, weight, compute_dtype=jnp.bfloat16)
    )
    assert jnp.allclose(out_bc, ref, atol=5e-2, rtol=5e-2)

    # bf16 output as well: halves the dominant 48-channel HBM write stream.
    out_bo = jax.block_until_ready(
        overlap_patch_embed(x, weight, compute_dtype=jnp.bfloat16,
                            out_dtype=jnp.bfloat16)
    )
    assert out_bo.dtype == jnp.bfloat16
    assert jnp.allclose(out_bo.astype(jnp.float32), ref, atol=5e-2, rtol=5e-2)

    print("KERNEL_OK")
</pallas_src>

<mosaic_0001>
module attributes {stable_mosaic.version = 11 : i64} {
  func.func @_conv_rows_kernel(%arg0: i32, %arg1: i32, %arg2: i32, %arg3: memref<1x1x18x54xf32, #tpu.memory_space<vmem>>, %arg4: memref<3x54x768xf32, #tpu.memory_space<vmem>>, %arg5: memref<1x16x768xf32, #tpu.memory_space<vmem>>) attributes {dimension_semantics = [#tpu.dimension_semantics<parallel>, #tpu.dimension_semantics<parallel>, #tpu.dimension_semantics<arbitrary>], iteration_bounds = array<i64: 2, 1, 1>, scalar_prefetch = 0 : i64, scratch_operands = 0 : i64, tpu.core_type = #tpu.core_type<tc>, window_params = [{transform_indices = @transform_0, window_bounds = array<i64: 1, 1, 18, 54>}, {pipeline_mode = #tpu.pipeline_mode<synchronous>, transform_indices = @transform_1, window_bounds = array<i64: 3, 54, 768>}, {transform_indices = @transform_2, window_bounds = array<i64: 1, 16, 768>}]} {
    %c16_i32 = arith.constant 16 : i32
    %0 = arith.muli %arg2, %c16_i32 : i32
    %1 = tpu.assume_multiple %0, 8 : i32
    %c0 = arith.constant 0 : index
    %c0_0 = arith.constant 0 : index
    %2 = arith.index_cast %1 : i32 to index
    %c0_1 = arith.constant 0 : index
    %3 = vector.load %arg3[%c0, %c0_0, %2, %c0_1] : memref<1x1x18x54xf32, #tpu.memory_space<vmem>>, vector<1x1x16x54xf32>
    %4 = vector.shape_cast %3 : vector<1x1x16x54xf32> to vector<16x54xf32>
    %c0_2 = arith.constant 0 : index
    %c0_3 = arith.constant 0 : index
    %c0_4 = arith.constant 0 : index
    %5 = vector.load %arg4[%c0_2, %c0_3, %c0_4] : memref<3x54x768xf32, #tpu.memory_space<vmem>>, vector<1x54x768xf32>
    %6 = vector.shape_cast %5 : vector<1x54x768xf32> to vector<54x768xf32>
    %cst = arith.constant dense<0.000000e+00> : vector<16x768xf32>
    %7 = tpu.matmul %4, %6, %cst {dimension_numbers = #tpu.dot_dimension_numbers<[1], [0], [0], [1], [0, 0, 1, 1], [], []>} : vector<16x54xf32>, vector<54x768xf32>, vector<16x768xf32> -> vector<16x768xf32>
    %c1_i32 = arith.constant 1 : i32
    %8 = arith.addi %1, %c1_i32 : i32
    %c0_5 = arith.constant 0 : index
    %c0_6 = arith.constant 0 : index
    %9 = arith.index_cast %8 : i32 to index
    %c0_7 = arith.constant 0 : index
    %10 = vector.load %arg3[%c0_5, %c0_6, %9, %c0_7] : memref<1x1x18x54xf32, #tpu.memory_space<vmem>>, vector<1x1x16x54xf32>
    %11 = vector.shape_cast %10 : vector<1x1x16x54xf32> to vector<16x54xf32>
    %c1 = arith.constant 1 : index
    %c0_8 = arith.constant 0 : index
    %c0_9 = arith.constant 0 : index
    %12 = vector.load %arg4[%c1, %c0_8, %c0_9] : memref<3x54x768xf32, #tpu.memory_space<vmem>>, vector<1x54x768xf32>
    %13 = vector.shape_cast %12 : vector<1x54x768xf32> to vector<54x768xf32>
    %cst_10 = arith.constant dense<0.000000e+00> : vector<16x768xf32>
    %14 = tpu.matmul %11, %13, %cst_10 {dimension_numbers = #tpu.dot_dimension_numbers<[1], [0], [0], [1], [0, 0, 1, 1], [], []>} : vector<16x54xf32>, vector<54x768xf32>, vector<16x768xf32> -> vector<16x768xf32>
    %15 = arith.addf %7, %14 : vector<16x768xf32>
    %c2_i32 = arith.constant 2 : i32
    %16 = arith.addi %1, %c2_i32 : i32
    %c0_11 = arith.constant 0 : index
    %c0_12 = arith.constant 0 : index
    %17 = arith.index_cast %16 : i32 to index
    %c0_13 = arith.constant 0 : index
    %18 = vector.load %arg3[%c0_11, %c0_12, %17, %c0_13] : memref<1x1x18x54xf32, #tpu.memory_space<vmem>>, vector<1x1x16x54xf32>
    %19 = vector.shape_cast %18 : vector<1x1x16x54xf32> to vector<16x54xf32>
    %c2 = arith.constant 2 : index
    %c0_14 = arith.constant 0 : index
    %c0_15 = arith.constant 0 : index
    %20 = vector.load %arg4[%c2, %c0_14, %c0_15] : memref<3x54x768xf32, #tpu.memory_space<vmem>>, vector<1x54x768xf32>
    %21 = vector.shape_cast %20 : vector<1x54x768xf32> to vector<54x768xf32>
    %cst_16 = arith.constant dense<0.000000e+00> : vector<16x768xf32>
    %22 = tpu.matmul %19, %21, %cst_16 {dimension_numbers = #tpu.dot_dimension_numbers<[1], [0], [0], [1], [0, 0, 1, 1], [], []>} : vector<16x54xf32>, vector<54x768xf32>, vector<16x768xf32> -> vector<16x768xf32>
    %23 = arith.addf %15, %22 : vector<16x768xf32>
    %c0_17 = arith.constant 0 : index
    %c0_18 = arith.constant 0 : index
    %c0_19 = arith.constant 0 : index
    %24 = vector.load %arg5[%c0_17, %c0_18, %c0_19] : memref<1x16x768xf32, #tpu.memory_space<vmem>>, vector<1x16x768xf32>
    %25 = vector.shape_cast %24 : vector<1x16x768xf32> to vector<16x768xf32>
    %26 = vector.shape_cast %23 : vector<16x768xf32> to vector<1x16x768xf32>
    tpu.vector_store %arg5[%c0_17, %c0_18, %c0_19], %26 {strides = array<i32>} : memref<1x16x768xf32, #tpu.memory_space<vmem>>, vector<1x16x768xf32>,
    return
  }
  func.func @transform_0(%arg0: i32, %arg1: i32, %arg2: i32) -> (i32, i32, i32, i32) {
    %c0_i32 = arith.constant 0 : i32
    %c0_i32_0 = arith.constant 0 : i32
    %c0_i32_1 = arith.constant 0 : i32
    return %arg0, %arg1, %c0_i32, %c0_i32_0 : i32, i32, i32, i32
  }
  func.func @transform_1(%arg0: i32, %arg1: i32, %arg2: i32) -> (i32, i32, i32) {
    %c0_i32 = arith.constant 0 : i32
    %c0_i32_0 = arith.constant 0 : i32
    %c0_i32_1 = arith.constant 0 : i32
    %c0_i32_2 = arith.constant 0 : i32
    return %c0_i32, %c0_i32_0, %c0_i32_1 : i32, i32, i32
  }
  func.func @transform_2(%arg0: i32, %arg1: i32, %arg2: i32) -> (i32, i32, i32) {
    %c0_i32 = arith.constant 0 : i32
    return %arg0, %arg2, %arg1 : i32, i32, i32
  }
}

</mosaic_0001>

<llo_original>
// kernel: tpu_custom_call.1
$region0: #{tpu_custom_call.1}
  #allocation0 [shape = 'u32[]', space=smem, size = 0x4, offset = 0x4, fixed_abs, tag = 'smem constant byte address 0x4 - core index']
  #allocation1 [shape = 'u32[144,128]{1,0:T(1,128)}', space=vmem, size = 0x12000, scoped, tag = 'internal scratch']
  %s0 = inlined_call_operand.vmem [shape: f32[2,1,18,54], index: 0, kind: input, shape index: {}]
  %s1 = inlined_call_operand.hbm [shape: f32[3,54,768], index: 1, kind: input, shape index: {}]
  %s2 = inlined_call_operand.hbm [shape: f32[2,16,768], index: 2, kind: output, shape index: {}]
  %s3 = sld [smem:[#allocation0]]
  $region45: #{tpu_custom_call.1} parent=0
    _
  %s5 = ssub.s32 1, %s3
  %s6 = scalar_select 0, %s5, %s3
  $region1: #{tpu_custom_call.1} parent=0
    #allocation2 [shape = 'u8[516096]{0}', space=vmem, size = 0x7e000, scoped, tag = 'input window, operand 1, single buffered']
    #allocation3 [shape = 's32[2]{0}', space=sflag, size = 0x8, scoped, tag = 'scoped memory for tpu_custom_call.1']
    #allocation4 [shape = 's32[2]{0}', space=sflag, size = 0x8, scoped, tag = 'scoped memory for tpu_custom_call.1']
    #allocation5 [shape = 'u8[98304]{0}', space=vmem, size = 0x18000, scoped, tag = 'output window, operand 0']
    %7 = vsyncpa [#allocation3], 0
    %8 = vsyncpa [#allocation4], 0
    %s9 = scalar_lea.sflag [#allocation4], 1
    %10 = vsyncpa %s9, 0
    loop: start=0, step=1, limit=4
    $region2: #{tpu_custom_call.1} parent=1 // loop_pre_header
      _
    $region3: #{tpu_custom_call.1} parent=1 // loop_header
      %s12 = sphi 0, %s16
      %p13 = scmp.ge.s32.totalorder %s12, 4
      %s19 = sphi 0, %s38
      %s20 = sphi 0, %s34
      %s21 = sphi 0, %s30
      %s22 = sphi 0, %s19
      %s23 = sphi 0, %s20
      %s24 = sphi 0, %s21
      %s25 = sphi 0, %s22
      %s26 = sphi 0, %s23
      %s27 = sphi 0, %s24
      %s43 = sphi 0, %s45
      %s46 = sphi 0, %s43
      %s47 = sphi 0, %s46
      %s63 = sphi 0, %s47
      %s67 = sphi 0, %s67
      %s69 = sphi 0, %s67
      %s70 = sphi 0, %s69
      %s84 = sphi 0, %s70
      %s94 = sphi 0, %s96
      %s97 = sphi 0, %s94
      %s98 = sphi 0, %s97
      %s114 = sphi 0, %s98
    $region4: #{tpu_custom_call.1} parent=1 // loop_header_branch
      %15 = sbr.rel (%p13) target = $region8
    $region5: #{tpu_custom_call.1} parent=1 // loop_body
      %s17 = ssub.s32 %s12, 1
      %s18 = ssub.s32 %s12, 2
      %s28 = sadd.s32 1, %s21
      %p29 = scmp.ge.s32.totalorder %s28, 1
      %s30 = scalar_select %p29, 0, %s28
      %s31 = sadd.s32 1, %s20
      %s32 = scalar_select %p29, %s31, %s20
      %p33 = scmp.ge.s32.totalorder %s32, 1
      %s34 = scalar_select %p33, 0, %s32
      %s35 = sadd.s32 1, %s19
      %s36 = scalar_select %p33, %s35, %s19
      %p37 = scmp.ge.s32.totalorder %s36, 2
      %s38 = scalar_select %p37, 0, %s36
      %s39 = ssub.s32 %s19, %s38
      %s40 = ssub.s32 %s20, %s34
      %s41 = sor.u32 %s39, %s40
      %p42 = scmp.eq.s32.totalorder %s41, 0
      %s44 = sadd.s32 %s43, 1
      %s45 = scalar_select %p42, %s43, %s44
      %p48 = pneg %p42
      %p49 = scmp.eq.s32.totalorder %s12, 1
      %p50 = por %p48, %p49
      %p51 = scmp.ne.s32.totalorder %s43, %s46
      %p52 = scmp.eq.s32.totalorder %s12, 0
      %p53 = por %p51, %p52
      %p54 = scmp.ne.s32.totalorder %s43, %s46
      %p55 = scmp.eq.s32.totalorder %s17, 1
      %p56 = por %p54, %p55
      %p57 = scmp.ne.s32.totalorder %s46, %s47
      %p58 = scmp.eq.s32.totalorder %s17, 0
      %p59 = por %p57, %p58
      %p60 = scmp.ne.s32.totalorder %s46, %s47
      %p61 = scmp.eq.s32.totalorder %s18, 1
      %p62 = por %p60, %p61
      %p64 = scmp.ne.s32.totalorder %s47, %s63
      %p65 = scmp.eq.s32.totalorder %s18, 0
      %p66 = por %p64, %p65
      %s68 = sadd.s32 %s67, 1
      %p71 = scmp.eq.s32.totalorder %s12, 1
      %p72 = scmp.ne.s32.totalorder %s67, %s69
      %p73 = scmp.eq.s32.totalorder %s12, 0
      %p74 = por %p72, %p73
      %p75 = scmp.ne.s32.totalorder %s67, %s69
      %p76 = scmp.eq.s32.totalorder %s17, 1
      %p77 = por %p75, %p76
      %p78 = scmp.ne.s32.totalorder %s69, %s70
      %p79 = scmp.eq.s32.totalorder %s17, 0
      %p80 = por %p78, %p79
      %p81 = scmp.ne.s32.totalorder %s69, %s70
      %p82 = scmp.eq.s32.totalorder %s18, 1
      %p83 = por %p81, %p82
      %p85 = scmp.ne.s32.totalorder %s70, %s84
      %p86 = scmp.eq.s32.totalorder %s18, 0
      %p87 = por %p85, %p86
      %s88 = ssub.s32 %s19, %s38
      %s89 = ssub.s32 %s21, %s30
      %s90 = sor.u32 %s88, %s89
      %s91 = ssub.s32 %s20, %s34
      %s92 = sor.u32 %s90, %s91
      %p93 = scmp.eq.s32.totalorder %s92, 0
      %s95 = sadd.s32 %s94, 1
      %s96 = scalar_select %p93, %s94, %s95
      %p99 = pneg %p93
      %p100 = scmp.eq.s32.totalorder %s12, 1
      %p101 = por %p99, %p100
      %p102 = scmp.ne.s32.totalorder %s94, %s97
      %p103 = scmp.eq.s32.totalorder %s12, 0
      %p104 = por %p102, %p103
      %p105 = scmp.ne.s32.totalorder %s94, %s97
      %p106 = scmp.eq.s32.totalorder %s17, 1
      %p107 = por %p105, %p106
      %p108 = scmp.ne.s32.totalorder %s97, %s98
      %p109 = scmp.eq.s32.totalorder %s17, 0
      %p110 = por %p108, %p109
      %p111 = scmp.ne.s32.totalorder %s97, %s98
      %p112 = scmp.eq.s32.totalorder %s18, 1
      %p113 = por %p111, %p112
      %p115 = scmp.ne.s32.totalorder %s98, %s114
      %p116 = scmp.eq.s32.totalorder %s18, 0
      %p117 = por %p115, %p116
      %p118 = scmp.le.s32.totalorder 1, %s12
      %p119 = scmp.lt.s32.totalorder %s12, 3
      %p120 = pnand %p118, %p119
      %p121 = pneg %p120
      // Predicated region
      $region9: #{tpu_custom_call.1} parent=5 // pred_check
        _
      $region10: #{tpu_custom_call.1} parent=5 // pred_check_branch
        %123 = sbr.rel (%p120) target = $region12
      $region11: #{tpu_custom_call.1} parent=5 // pred_region
        %s124 = ssub.s32 %s12, 1
        // Predicated region
        $region13: #{tpu_custom_call.1} parent=11 // pred_check
          %p125 = pneg %p80
        $region14: #{tpu_custom_call.1} parent=11 // pred_check_branch
          %127 = sbr.rel (%p125) target = $region16
        $region15: #{tpu_custom_call.1} parent=11 // pred_region
          %s129 = ssub.s32 16128, 16128
          %130 = vsyncadd [#allocation3], %s129
          %s131 = sshll.u32 [#allocation2], 4
          %s132 = int_to_ptr.vmem [resolvable:$true] %s131
          %137 = dma.hbm_to_vmem [thread:$0]  %s1, 16128, %s132, [#allocation3], 768, 768, 48
        $region16: #{tpu_custom_call.1} parent=11 // pred_fallthru
          _
      $region12: #{tpu_custom_call.1} parent=5 // pred_fallthru
        _
      %p138 = scmp.lt.s32.totalorder %s12, 2
      // Predicated region
      $region17: #{tpu_custom_call.1} parent=5 // pred_check
        %p139 = pneg %p138
      $region18: #{tpu_custom_call.1} parent=5 // pred_check_branch
        %141 = sbr.rel (%p139) target = $region20
      $region19: #{tpu_custom_call.1} parent=5 // pred_region
        // Predicated region
        $region21: #{tpu_custom_call.1} parent=19 // pred_check
          %p142 = pneg %p53
        $region22: #{tpu_custom_call.1} parent=19 // pred_check_branch
          %144 = sbr.rel (%p142) target = $region24
        $region23: #{tpu_custom_call.1} parent=19 // pred_region
          %p145 = scmp.lt.s32.totalorder %s19, 1
          %s146 = scalar_select %p145, %s19, 1
          %p147 = scmp.lt.s32.totalorder %s20, 0
          %s148 = scalar_select %p147, %s20, 0
          %s149 = smul.addr %s148, 3
          %s150 = smul.addr %s146, 3
          %s151 = sadd.s32 %s149, %s150
          %s152 = smul.addr %s151, 8
          %s153 = scalar_lea.vmem %s0, %s152
        $region24: #{tpu_custom_call.1} parent=19 // pred_fallthru
          _
      $region20: #{tpu_custom_call.1} parent=5 // pred_fallthru
        _
      %p154 = scmp.le.s32.totalorder 1, %s12
      %p155 = scmp.lt.s32.totalorder %s12, 3
      %p156 = pnand %p154, %p155
      %p157 = pneg %p156
      // Predicated region
      $region25: #{tpu_custom_call.1} parent=5 // pred_check
        _
      $region26: #{tpu_custom_call.1} parent=5 // pred_check_branch
        %159 = sbr.rel (%p156) target = $region28
      $region27: #{tpu_custom_call.1} parent=5 // pred_region
        %s160 = ssub.s32 %s12, 1
        // Predicated region
        $region29: #{tpu_custom_call.1} parent=27 // pred_check
          %p161 = pneg %p80
        $region30: #{tpu_custom_call.1} parent=27 // pred_check_branch
          %163 = sbr.rel (%p161) target = $region32
        $region31: #{tpu_custom_call.1} parent=27 // pred_region
          %164 = dma.done [#allocation3], 16128
        $region32: #{tpu_custom_call.1} parent=27 // pred_fallthru
          _
        %p165 = scmp.lt.s32.totalorder %s22, 1
        %s166 = scalar_select %p165, %s22, 1
        %p167 = scmp.lt.s32.totalorder %s23, 0
        %s168 = scalar_select %p167, %s23, 0
        %s169 = smul.addr %s168, 3
        %s170 = smul.addr %s166, 3
        %s171 = sadd.s32 %s169, %s170
        %s172 = smul.addr %s171, 8
        %s173 = scalar_lea.vmem %s0, %s172
        %p174 = pneg %p59
        %p175 = pneg %p56
        %p176 = pneg %p80
        %p177 = pneg %p77
        %p178 = pneg %p110
        %p179 = pneg %p107
        %s180 = sand.u32 %s97, 1
        %s181 = scalar_lea.sflag [#allocation4], %s180
        %s182 = sand.u32 %s97, 1
        %s183 = smul.addr %s182, 96
        %s184 = scalar_lea.vmem [#allocation5], %s183
        %p185 = scmp.lt.s32.totalorder %s22, 1
        %s186 = scalar_select %p185, %s22, 1
        %p187 = scmp.lt.s32.totalorder %s23, 0
        %s188 = scalar_select %p187, %s23, 0
        %s189 = smul.addr %s188, 3
        %s190 = smul.addr %s186, 3
        %s191 = sadd.s32 %s189, %s190
        %s192 = smul.addr %s191, 8
        %s193 = scalar_lea.vmem %s0, %s192
        %s194 = smul.u32 2, %s24
        %s195 = smul.u32 6, %s23
        %s196 = smul.u32 %s24, 16
        %s197 = scalar_lea.vmem %s193, %s196
        %v198 = vld [vmem:[%s197] sm:$0xff]
        %v199 = vld [vmem:[%s197 + $0x8] sm:$0xff]
        %v200 = vld [vmem:[#allocation2] sm:$0xff]
        %v201 = vld [vmem:[#allocation2 + $0x8] sm:$0xff]
        %v202 = vld [vmem:[#allocation2 + $0x10] sm:$0xff]
        %v203 = vld [vmem:[#allocation2 + $0x18] sm:$0xff]
        %v204 = vld [vmem:[#allocation2 + $0x20] sm:$0xff]
        %v205 = vld [vmem:[#allocation2 + $0x28] sm:$0xff]
        %v206 = vld [vmem:[#allocation2 + $0x30] sm:$0xff]
        %v207 = vld [vmem:[#allocation2 + $0x38] sm:$0xff]
        %v208 = vld [vmem:[#allocation2 + $0x40] sm:$0xff]
        %v209 = vld [vmem:[#allocation2 + $0x48] sm:$0xff]
        %v210 = vld [vmem:[#allocation2 + $0x50] sm:$0xff]
        %v211 = vld [vmem:[#allocation2 + $0x58] sm:$0xff]
        %v212 = vld [vmem:[#allocation2 + $0x60] sm:$0xff]
        %v213 = vld [vmem:[#allocation2 + $0x68] sm:$0xff]
        %v214 = vld [vmem:[#allocation2 + $0x70] sm:$0xff]
        %v215 = vld [vmem:[#allocation2 + $0x78] sm:$0xff]
        %v216 = vld [vmem:[#allocation2 + $0x80] sm:$0xff]
        %v217 = vld [vmem:[#allocation2 + $0x88] sm:$0xff]
        %v218 = vld [vmem:[#allocation2 + $0x90] sm:$0xff]
        %v219 = vld [vmem:[#allocation2 + $0x98] sm:$0xff]
        %v220 = vld [vmem:[#allocation2 + $0xa0] sm:$0xff]
        %v221 = vld [vmem:[#allocation2 + $0xa8] sm:$0xff]
        %v222 = vld [vmem:[#allocation2 + $0xb0] sm:$0xff]
        %v223 = vld [vmem:[#allocation2 + $0xb8] sm:$0xff]
        %v224 = vld [vmem:[#allocation2 + $0xc0] sm:$0xff]
        %v225 = vld [vmem:[#allocation2 + $0xc8] sm:$0xff]
        %v226 = vld [vmem:[#allocation2 + $0xd0] sm:$0xff]
        %v227 = vld [vmem:[#allocation2 + $0xd8] sm:$0xff]
        %v228 = vld [vmem:[#allocation2 + $0xe0] sm:$0xff]
        %v229 = vld [vmem:[#allocation2 + $0xe8] sm:$0xff]
        %v230 = vld [vmem:[#allocation2 + $0xf0] sm:$0xff]
        %v231 = vld [vmem:[#allocation2 + $0xf8] sm:$0xff]
        %v232 = vld [vmem:[#allocation2 + $0x100] sm:$0xff]
        %v233 = vld [vmem:[#allocation2 + $0x108] sm:$0xff]
        %v234 = vld [vmem:[#allocation2 + $0x110] sm:$0xff]
        %v235 = vld [vmem:[#allocation2 + $0x118] sm:$0xff]
        %v236 = vld [vmem:[#allocation2 + $0x120] sm:$0x3f]
        %v237 = vld [vmem:[#allocation2 + $0x128] sm:$0x3f]
        %v238 = vld [vmem:[#allocation2 + $0x130] sm:$0x3f]
        %v239 = vld [vmem:[#allocation2 + $0x138] sm:$0x3f]
        %v240 = vld [vmem:[#allocation2 + $0x140] sm:$0x3f]
        %v241 = vld [vmem:[#allocation2 + $0x148] sm:$0x3f]
        %s242 = sadd.s32 %s196, 1
        %s243 = scalar_lea.vmem %s193, %s242
        %v244 = vld [vmem:[%s243] sm:$0xff]
        %v245 = vld [vmem:[%s243 + $0x8] sm:$0xff]
        %s246 = scalar_lea.vmem [#allocation2], 336
        %v247 = vld [vmem:[%s246] sm:$0xff]
        %v248 = vld [vmem:[%s246 + $0x8] sm:$0xff]
        %v249 = vld [vmem:[%s246 + $0x10] sm:$0xff]
        %v250 = vld [vmem:[%s246 + $0x18] sm:$0xff]
        %v251 = vld [vmem:[%s246 + $0x20] sm:$0xff]
        %v252 = vld [vmem:[%s246 + $0x28] sm:$0xff]
        %v253 = vld [vmem:[%s246 + $0x30] sm:$0xff]
        %v254 = vld [vmem:[%s246 + $0x38] sm:$0xff]
        %v255 = vld [vmem:[%s246 + $0x40] sm:$0xff]
        %v256 = vld [vmem:[%s246 + $0x48] sm:$0xff]
        %v257 = vld [vmem:[%s246 + $0x50] sm:$0xff]
        %v258 = vld [vmem:[%s246 + $0x58] sm:$0xff]
        %v259 = vld [vmem:[%s246 + $0x60] sm:$0xff]
        %v260 = vld [vmem:[%s246 + $0x68] sm:$0xff]
        %v261 = vld [vmem:[%s246 + $0x70] sm:$0xff]
        %v262 = vld [vmem:[%s246 + $0x78] sm:$0xff]
        %v263 = vld [vmem:[%s246 + $0x80] sm:$0xff]
        %v264 = vld [vmem:[%s246 + $0x88] sm:$0xff]
        %v265 = vld [vmem:[%s246 + $0x90] sm:$0xff]
        %v266 = vld [vmem:[%s246 + $0x98] sm:$0xff]
        %v267 = vld [vmem:[%s246 + $0xa0] sm:$0xff]
        %v268 = vld [vmem:[%s246 + $0xa8] sm:$0xff]
        %v269 = vld [vmem:[%s246 + $0xb0] sm:$0xff]
        %v270 = vld [vmem:[%s246 + $0xb8] sm:$0xff]
        %v271 = vld [vmem:[%s246 + $0xc0] sm:$0xff]
        %v272 = vld [vmem:[%s246 + $0xc8] sm:$0xff]
        %v273 = vld [vmem:[%s246 + $0xd0] sm:$0xff]
        %v274 = vld [vmem:[%s246 + $0xd8] sm:$0xff]
        %v275 = vld [vmem:[%s246 + $0xe0] sm:$0xff]
        %v276 = vld [vmem:[%s246 + $0xe8] sm:$0xff]
        %v277 = vld [vmem:[%s246 + $0xf0] sm:$0xff]
        %v278 = vld [vmem:[%s246 + $0xf8] sm:$0xff]
        %v279 = vld [vmem:[%s246 + $0x100] sm:$0xff]
        %v280 = vld [vmem:[%s246 + $0x108] sm:$0xff]
        %v281 = vld [vmem:[%s246 + $0x110] sm:$0xff]
        %v282 = vld [vmem:[%s246 + $0x118] sm:$0xff]
        %v283 = vld [vmem:[%s246 + $0x120] sm:$0x3f]
        %v284 = vld [vmem:[%s246 + $0x128] sm:$0x3f]
        %v285 = vld [vmem:[%s246 + $0x130] sm:$0x3f]
        %v286 = vld [vmem:[%s246 + $0x138] sm:$0x3f]
        %v287 = vld [vmem:[%s246 + $0x140] sm:$0x3f]
        %v288 = vld [vmem:[%s246 + $0x148] sm:$0x3f]
        %vm289 = vcmask 441344
        %v291 = vsel %vm289, %v244, 0
        %v294 = vsel %vm289, %v245, 0
        %vm296 = vcmask 1045504
        %v298 = vsel %vm296, %v283, 0
        %v301 = vsel %vm296, %v284, 0
        %v304 = vsel %vm296, %v285, 0
        %v307 = vsel %vm296, %v286, 0
        %v310 = vsel %vm296, %v287, 0
        %v313 = vsel %vm296, %v288, 0
        %315 = vmatprep.subr.mxu0 0.0
        %316 = vmatpush1.msra.mxu0 0.0
        %317 = vmatprep.subr.mxu0 0.0
        %318 = vmatpush1.msra.mxu0 0.0
        %319 = vmatprep.subr.mxu0 0.0
        %320 = vmatpush1.msra.mxu0 0.0
        %321 = vmatprep.subr.mxu0 0.0
        %322 = vmatpush1.msra.mxu0 0.0
        %323 = vmatprep.subr.mxu0 0.0
        %324 = vmatpush1.msra.mxu0 0.0
        %325 = vmatprep.subr.mxu0 0.0
        %326 = vmatpush1.msra.mxu0 0.0
        %327 = vmatprep.subr.mxu0 0.0
        %328 = vmatpush1.msra.mxu0 0.0
        %329 = vmatprep.subr.mxu0 0.0
        %330 = vmatpush1.msra.mxu0 0.0
        %331 = vmatprep.subr.mxu0 0.0
        %332 = vmatpush1.msra.mxu0 0.0
        %333 = vmatprep.subr.mxu0 %v301
        %334 = vmatpush1.msra.mxu0 %v298
        %335 = vmatprep.subr.mxu0 %v278
        %336 = vmatpush1.msra.mxu0 %v277
        %337 = vmatprep.subr.mxu0 %v272
        %338 = vmatpush1.msra.mxu0 %v271
        %339 = vmatprep.subr.mxu0 %v266
        %340 = vmatpush1.msra.mxu0 %v265
        %341 = vmatprep.subr.mxu0 %v260
        %342 = vmatpush1.msra.mxu0 %v259
        %343 = vmatprep.subr.mxu0 %v254
        %344 = vmatpush1.msra.mxu0 %v253
        %345 = vmatprep.subr.mxu0 %v248
        %346 = vmatpush1.msra.mxu0 %v247
        %347 = vmatprep.subr.mxu0 0.0
        %348 = vmatpush2.msra.mxu0 0.0
        %349 = vmatprep.subr.mxu0 0.0
        %350 = vmatpush2.msra.mxu0 0.0
        %351 = vmatprep.subr.mxu0 0.0
        %352 = vmatpush2.msra.mxu0 0.0
        %353 = vmatprep.subr.mxu0 0.0
        %354 = vmatpush2.msra.mxu0 0.0
        %355 = vmatprep.subr.mxu0 0.0
        %356 = vmatpush2.msra.mxu0 0.0
        %357 = vmatprep.subr.mxu0 0.0
        %358 = vmatpush2.msra.mxu0 0.0
        %359 = vmatprep.subr.mxu0 0.0
        %360 = vmatpush2.msra.mxu0 0.0
        %361 = vmatprep.subr.mxu0 0.0
        %362 = vmatpush2.msra.mxu0 0.0
        %363 = vmatprep.subr.mxu0 0.0
        %364 = vmatpush2.msra.mxu0 0.0
        %365 = vmatprep.subr.mxu0 0.0
        %366 = vmatpush2.msra.mxu0 0.0
        %367 = vmatprep.subr.mxu0 0.0
        %368 = vmatpush2.msra.mxu0 0.0
        %369 = vmatprep.subr.mxu0 0.0
        %370 = vmatpush2.msra.mxu0 0.0
        %371 = vmatprep.subr.mxu0 0.0
        %372 = vmatpush2.msra.mxu0 0.0
        %373 = vmatprep.subr.mxu0 0.0
        %374 = vmatpush2.msra.mxu0 0.0
        %375 = vmatprep.subr.mxu0 0.0
        %376 = vmatpush2.msra.mxu0 0.0
        %377 = vmatprep.subr.mxu0 0.0
        %378 = vmatpush2.msra.mxu0 0.0
        %379 = vmatprep.mubr.f32.mxu0 0.0
        %380 = vmatmul.mubr.f32.gmra.mxu0 %v291
        %v381 = vpop.f32.mrf.mxu0
        %v382 = vadd.f32 0.0, %v381
        %v383 = vpop.f32.mrf.mxu0
        %v384 = vadd.f32 0.0, %v383
        %385 = vmatprep.mubr.f32.mxu0 0.0
        %386 = vmatmul.mubr.f32.gmra.mxu0 %v294
        %v387 = vpop.f32.mrf.mxu0
        %v388 = vadd.f32 0.0, %v387
        %v389 = vpop.f32.mrf.mxu0
        %v390 = vadd.f32 0.0, %v389
        %391 = vdwg.mxu0
        %392 = vmatprep.subr.mxu0 0.0
        %393 = vmatpush1.msra.mxu0 0.0
        %394 = vmatprep.subr.mxu0 0.0
        %395 = vmatpush1.msra.mxu0 0.0
        %396 = vmatprep.subr.mxu0 0.0
        %397 = vmatpush1.msra.mxu0 0.0
        %398 = vmatprep.subr.mxu0 0.0
        %399 = vmatpush1.msra.mxu0 0.0
        %400 = vmatprep.subr.mxu0 0.0
        %401 = vmatpush1.msra.mxu0 0.0
        %402 = vmatprep.subr.mxu0 0.0
        %403 = vmatpush1.msra.mxu0 0.0
        %404 = vmatprep.subr.mxu0 0.0
        %405 = vmatpush1.msra.mxu0 0.0
        %406 = vmatprep.subr.mxu0 0.0
        %407 = vmatpush1.msra.mxu0 0.0
        %408 = vmatprep.subr.mxu0 0.0
        %409 = vmatpush1.msra.mxu0 0.0
        %410 = vmatprep.subr.mxu0 %v307
        %411 = vmatpush1.msra.mxu0 %v304
        %412 = vmatprep.subr.mxu0 %v280
        %413 = vmatpush1.msra.mxu0 %v279
        %414 = vmatprep.subr.mxu0 %v274
        %415 = vmatpush1.msra.mxu0 %v273
        %416 = vmatprep.subr.mxu0 %v268
        %417 = vmatpush1.msra.mxu0 %v267
        %418 = vmatprep.subr.mxu0 %v262
        %419 = vmatpush1.msra.mxu0 %v261
        %420 = vmatprep.subr.mxu0 %v256
        %421 = vmatpush1.msra.mxu0 %v255
        %422 = vmatprep.subr.mxu0 %v250
        %423 = vmatpush1.msra.mxu0 %v249
        %424 = vmatprep.subr.mxu0 0.0
        %425 = vmatpush2.msra.mxu0 0.0
        %426 = vmatprep.subr.mxu0 0.0
        %427 = vmatpush2.msra.mxu0 0.0
        %428 = vmatprep.subr.mxu0 0.0
        %429 = vmatpush2.msra.mxu0 0.0
        %430 = vmatprep.subr.mxu0 0.0
        %431 = vmatpush2.msra.mxu0 0.0
        %432 = vmatprep.subr.mxu0 0.0
        %433 = vmatpush2.msra.mxu0 0.0
        %434 = vmatprep.subr.mxu0 0.0
        %435 = vmatpush2.msra.mxu0 0.0
        %436 = vmatprep.subr.mxu0 0.0
        %437 = vmatpush2.msra.mxu0 0.0
        %438 = vmatprep.subr.mxu0 0.0
        %439 = vmatpush2.msra.mxu0 0.0
        %440 = vmatprep.subr.mxu0 0.0
        %441 = vmatpush2.msra.mxu0 0.0
        %442 = vmatprep.subr.mxu0 0.0
        %443 = vmatpush2.msra.mxu0 0.0
        %444 = vmatprep.subr.mxu0 0.0
        %445 = vmatpush2.msra.mxu0 0.0
        %446 = vmatprep.subr.mxu0 0.0
        %447 = vmatpush2.msra.mxu0 0.0
        %448 = vmatprep.subr.mxu0 0.0
        %449 = vmatpush2.msra.mxu0 0.0
        %450 = vmatprep.subr.mxu0 0.0
        %451 = vmatpush2.msra.mxu0 0.0
        %452 = vmatprep.subr.mxu0 0.0
        %453 = vmatpush2.msra.mxu0 0.0
        %454 = vmatprep.subr.mxu0 0.0
        %455 = vmatpush2.msra.mxu0 0.0
        %456 = vmatprep.mubr.f32.mxu0 0.0
        %457 = vmatmul.mubr.f32.gmra.mxu0 %v291
        %v458 = vpop.f32.mrf.mxu0
        %v459 = vadd.f32 0.0, %v458
        %v460 = vpop.f32.mrf.mxu0
        %v461 = vadd.f32 0.0, %v460
        %462 = vmatprep.mubr.f32.mxu0 0.0
        %463 = vmatmul.mubr.f32.gmra.mxu0 %v294
        %v464 = vpop.f32.mrf.mxu0
        %v465 = vadd.f32 0.0, %v464
        %v466 = vpop.f32.mrf.mxu0
        %v467 = vadd.f32 0.0, %v466
        %468 = vdwg.mxu0
        %469 = vmatprep.subr.mxu0 0.0
        %470 = vmatpush1.msra.mxu0 0.0
        %471 = vmatprep.subr.mxu0 0.0
        %472 = vmatpush1.msra.mxu0 0.0
        %473 = vmatprep.subr.mxu0 0.0
        %474 = vmatpush1.msra.mxu0 0.0
        %475 = vmatprep.subr.mxu0 0.0
        %476 = vmatpush1.msra.mxu0 0.0
        %477 = vmatprep.subr.mxu0 0.0
        %478 = vmatpush1.msra.mxu0 0.0
        %479 = vmatprep.subr.mxu0 0.0
        %480 = vmatpush1.msra.mxu0 0.0
        %481 = vmatprep.subr.mxu0 0.0
        %482 = vmatpush1.msra.mxu0 0.0
        %483 = vmatprep.subr.mxu0 0.0
        %484 = vmatpush1.msra.mxu0 0.0
        %485 = vmatprep.subr.mxu0 0.0
        %486 = vmatpush1.msra.mxu0 0.0
        %487 = vmatprep.subr.mxu0 %v313
        %488 = vmatpush1.msra.mxu0 %v310
        %489 = vmatprep.subr.mxu0 %v282
        %490 = vmatpush1.msra.mxu0 %v281
        %491 = vmatprep.subr.mxu0 %v276
        %492 = vmatpush1.msra.mxu0 %v275
        %493 = vmatprep.subr.mxu0 %v270
        %494 = vmatpush1.msra.mxu0 %v269
        %495 = vmatprep.subr.mxu0 %v264
        %496 = vmatpush1.msra.mxu0 %v263
        %497 = vmatprep.subr.mxu0 %v258
        %498 = vmatpush1.msra.mxu0 %v257
        %499 = vmatprep.subr.mxu0 %v252
        %500 = vmatpush1.msra.mxu0 %v251
        %501 = vmatprep.subr.mxu0 0.0
        %502 = vmatpush2.msra.mxu0 0.0
        %503 = vmatprep.subr.mxu0 0.0
        %504 = vmatpush2.msra.mxu0 0.0
        %505 = vmatprep.subr.mxu0 0.0
        %506 = vmatpush2.msra.mxu0 0.0
        %507 = vmatprep.subr.mxu0 0.0
        %508 = vmatpush2.msra.mxu0 0.0
        %509 = vmatprep.subr.mxu0 0.0
        %510 = vmatpush2.msra.mxu0 0.0
        %511 = vmatprep.subr.mxu0 0.0
        %512 = vmatpush2.msra.mxu0 0.0
        %513 = vmatprep.subr.mxu0 0.0
        %514 = vmatpush2.msra.mxu0 0.0
        %515 = vmatprep.subr.mxu0 0.0
        %516 = vmatpush2.msra.mxu0 0.0
        %517 = vmatprep.subr.mxu0 0.0
        %518 = vmatpush2.msra.mxu0 0.0
        %519 = vmatprep.subr.mxu0 0.0
        %520 = vmatpush2.msra.mxu0 0.0
        %521 = vmatprep.subr.mxu0 0.0
        %522 = vmatpush2.msra.mxu0 0.0
        %523 = vmatprep.subr.mxu0 0.0
        %524 = vmatpush2.msra.mxu0 0.0
        %525 = vmatprep.subr.mxu0 0.0
        %526 = vmatpush2.msra.mxu0 0.0
        %527 = vmatprep.subr.mxu0 0.0
        %528 = vmatpush2.msra.mxu0 0.0
        %529 = vmatprep.subr.mxu0 0.0
        %530 = vmatpush2.msra.mxu0 0.0
        %531 = vmatprep.subr.mxu0 0.0
        %532 = vmatpush2.msra.mxu0 0.0
        %533 = vmatprep.mubr.f32.mxu0 0.0
        %534 = vmatmul.mubr.f32.gmra.mxu0 %v291
        %v535 = vpop.f32.mrf.mxu0
        %v536 = vadd.f32 0.0, %v535
        %v537 = vpop.f32.mrf.mxu0
        %v538 = vadd.f32 0.0, %v537
        %539 = vmatprep.mubr.f32.mxu0 0.0
        %540 = vmatmul.mubr.f32.gmra.mxu0 %v294
        %v541 = vpop.f32.mrf.mxu0
        %v542 = vadd.f32 0.0, %v541
        %v543 = vpop.f32.mrf.mxu0
        %v544 = vadd.f32 0.0, %v543
        %545 = vdwg.mxu0
        %v547 = vsel %vm289, %v198, 0
        %v550 = vsel %vm289, %v199, 0
        %v553 = vsel %vm296, %v236, 0
        %v556 = vsel %vm296, %v237, 0
        %v559 = vsel %vm296, %v238, 0
        %v562 = vsel %vm296, %v239, 0
        %v565 = vsel %vm296, %v240, 0
        %v568 = vsel %vm296, %v241, 0
        %570 = vmatprep.subr.mxu0 0.0
        %571 = vmatpush1.msra.mxu0 0.0
        %572 = vmatprep.subr.mxu0 0.0
        %573 = vmatpush1.msra.mxu0 0.0
        %574 = vmatprep.subr.mxu0 0.0
        %575 = vmatpush1.msra.mxu0 0.0
        %576 = vmatprep.subr.mxu0 0.0
        %577 = vmatpush1.msra.mxu0 0.0
        %578 = vmatprep.subr.mxu0 0.0
        %579 = vmatpush1.msra.mxu0 0.0
        %580 = vmatprep.subr.mxu0 0.0
        %581 = vmatpush1.msra.mxu0 0.0
        %582 = vmatprep.subr.mxu0 0.0
        %583 = vmatpush1.msra.mxu0 0.0
        %584 = vmatprep.subr.mxu0 0.0
        %585 = vmatpush1.msra.mxu0 0.0
        %586 = vmatprep.subr.mxu0 0.0
        %587 = vmatpush1.msra.mxu0 0.0
        %588 = vmatprep.subr.mxu0 %v556
        %589 = vmatpush1.msra.mxu0 %v553
        %590 = vmatprep.subr.mxu0 %v231
        %591 = vmatpush1.msra.mxu0 %v230
        %592 = vmatprep.subr.mxu0 %v225
        %593 = vmatpush1.msra.mxu0 %v224
        %594 = vmatprep.subr.mxu0 %v219
        %595 = vmatpush1.msra.mxu0 %v218
        %596 = vmatprep.subr.mxu0 %v213
        %597 = vmatpush1.msra.mxu0 %v212
        %598 = vmatprep.subr.mxu0 %v207
        %599 = vmatpush1.msra.mxu0 %v206
        %600 = vmatprep.subr.mxu0 %v201
        %601 = vmatpush1.msra.mxu0 %v200
        %602 = vmatprep.subr.mxu0 0.0
        %603 = vmatpush2.msra.mxu0 0.0
        %604 = vmatprep.subr.mxu0 0.0
        %605 = vmatpush2.msra.mxu0 0.0
        %606 = vmatprep.subr.mxu0 0.0
        %607 = vmatpush2.msra.mxu0 0.0
        %608 = vmatprep.subr.mxu0 0.0
        %609 = vmatpush2.msra.mxu0 0.0
        %610 = vmatprep.subr.mxu0 0.0
        %611 = vmatpush2.msra.mxu0 0.0
        %612 = vmatprep.subr.mxu0 0.0
        %613 = vmatpush2.msra.mxu0 0.0
        %614 = vmatprep.subr.mxu0 0.0
        %615 = vmatpush2.msra.mxu0 0.0
        %616 = vmatprep.subr.mxu0 0.0
        %617 = vmatpush2.msra.mxu0 0.0
        %618 = vmatprep.subr.mxu0 0.0
        %619 = vmatpush2.msra.mxu0 0.0
        %620 = vmatprep.subr.mxu0 0.0
        %621 = vmatpush2.msra.mxu0 0.0
        %622 = vmatprep.subr.mxu0 0.0
        %623 = vmatpush2.msra.mxu0 0.0
        %624 = vmatprep.subr.mxu0 0.0
        %625 = vmatpush2.msra.mxu0 0.0
        %626 = vmatprep.subr.mxu0 0.0
        %627 = vmatpush2.msra.mxu0 0.0
        %628 = vmatprep.subr.mxu0 0.0
        %629 = vmatpush2.msra.mxu0 0.0
        %630 = vmatprep.subr.mxu0 0.0
        %631 = vmatpush2.msra.mxu0 0.0
        %632 = vmatprep.subr.mxu0 0.0
        %633 = vmatpush2.msra.mxu0 0.0
        %634 = vmatprep.mubr.f32.mxu0 0.0
        %635 = vmatmul.mubr.f32.gmra.mxu0 %v547
        %v636 = vpop.f32.mrf.mxu0
        %v637 = vadd.f32 %v382, %v636
        %v638 = vpop.f32.mrf.mxu0
        %v639 = vadd.f32 %v384, %v638
        %640 = vmatprep.mubr.f32.mxu0 0.0
        %641 = vmatmul.mubr.f32.gmra.mxu0 %v550
        %v642 = vpop.f32.mrf.mxu0
        %v643 = vadd.f32 %v388, %v642
        %v644 = vpop.f32.mrf.mxu0
        %v645 = vadd.f32 %v390, %v644
        %646 = vdwg.mxu0
        %647 = vmatprep.subr.mxu0 0.0
        %648 = vmatpush1.msra.mxu0 0.0
        %649 = vmatprep.subr.mxu0 0.0
        %650 = vmatpush1.msra.mxu0 0.0
        %651 = vmatprep.subr.mxu0 0.0
        %652 = vmatpush1.msra.mxu0 0.0
        %653 = vmatprep.subr.mxu0 0.0
        %654 = vmatpush1.msra.mxu0 0.0
        %655 = vmatprep.subr.mxu0 0.0
        %656 = vmatpush1.msra.mxu0 0.0
        %657 = vmatprep.subr.mxu0 0.0
        %658 = vmatpush1.msra.mxu0 0.0
        %659 = vmatprep.subr.mxu0 0.0
        %660 = vmatpush1.msra.mxu0 0.0
        %661 = vmatprep.subr.mxu0 0.0
        %662 = vmatpush1.msra.mxu0 0.0
        %663 = vmatprep.subr.mxu0 0.0
        %664 = vmatpush1.msra.mxu0 0.0
        %665 = vmatprep.subr.mxu0 %v562
        %666 = vmatpush1.msra.mxu0 %v559
        %667 = vmatprep.subr.mxu0 %v233
        %668 = vmatpush1.msra.mxu0 %v232
        %669 = vmatprep.subr.mxu0 %v227
        %670 = vmatpush1.msra.mxu0 %v226
        %671 = vmatprep.subr.mxu0 %v221
        %672 = vmatpush1.msra.mxu0 %v220
        %673 = vmatprep.subr.mxu0 %v215
        %674 = vmatpush1.msra.mxu0 %v214
        %675 = vmatprep.subr.mxu0 %v209
        %676 = vmatpush1.msra.mxu0 %v208
        %677 = vmatprep.subr.mxu0 %v203
        %678 = vmatpush1.msra.mxu0 %v202
        %679 = vmatprep.subr.mxu0 0.0
        %680 = vmatpush2.msra.mxu0 0.0
        %681 = vmatprep.subr.mxu0 0.0
        %682 = vmatpush2.msra.mxu0 0.0
        %683 = vmatprep.subr.mxu0 0.0
        %684 = vmatpush2.msra.mxu0 0.0
        %685 = vmatprep.subr.mxu0 0.0
        %686 = vmatpush2.msra.mxu0 0.0
        %687 = vmatprep.subr.mxu0 0.0
        %688 = vmatpush2.msra.mxu0 0.0
        %689 = vmatprep.subr.mxu0 0.0
        %690 = vmatpush2.msra.mxu0 0.0
        %691 = vmatprep.subr.mxu0 0.0
        %692 = vmatpush2.msra.mxu0 0.0
        %693 = vmatprep.subr.mxu0 0.0
        %694 = vmatpush2.msra.mxu0 0.0
        %695 = vmatprep.subr.mxu0 0.0
        %696 = vmatpush2.msra.mxu0 0.0
        %697 = vmatprep.subr.mxu0 0.0
        %698 = vmatpush2.msra.mxu0 0.0
        %699 = vmatprep.subr.mxu0 0.0
        %700 = vmatpush2.msra.mxu0 0.0
        %701 = vmatprep.subr.mxu0 0.0
        %702 = vmatpush2.msra.mxu0 0.0
        %703 = vmatprep.subr.mxu0 0.0
        %704 = vmatpush2.msra.mxu0 0.0
        %705 = vmatprep.subr.mxu0 0.0
        %706 = vmatpush2.msra.mxu0 0.0
        %707 = vmatprep.subr.mxu0 0.0
        %708 = vmatpush2.msra.mxu0 0.0
        %709 = vmatprep.subr.mxu0 0.0
        %710 = vmatpush2.msra.mxu0 0.0
        %711 = vmatprep.mubr.f32.mxu0 0.0
        %712 = vmatmul.mubr.f32.gmra.mxu0 %v547
        %v713 = vpop.f32.mrf.mxu0
        %v714 = vadd.f32 %v459, %v713
        %v715 = vpop.f32.mrf.mxu0
        %v716 = vadd.f32 %v461, %v715
        %717 = vmatprep.mubr.f32.mxu0 0.0
        %718 = vmatmul.mubr.f32.gmra.mxu0 %v550
        %v719 = vpop.f32.mrf.mxu0
        %v720 = vadd.f32 %v465, %v719
        %v721 = vpop.f32.mrf.mxu0
        %v722 = vadd.f32 %v467, %v721
        %723 = vdwg.mxu0
        %724 = vmatprep.subr.mxu0 0.0
        %725 = vmatpush1.msra.mxu0 0.0
        %726 = vmatprep.subr.mxu0 0.0
        %727 = vmatpush1.msra.mxu0 0.0
        %728 = vmatprep.subr.mxu0 0.0
        %729 = vmatpush1.msra.mxu0 0.0
        %730 = vmatprep.subr.mxu0 0.0
        %731 = vmatpush1.msra.mxu0 0.0
        %732 = vmatprep.subr.mxu0 0.0
        %733 = vmatpush1.msra.mxu0 0.0
        %734 = vmatprep.subr.mxu0 0.0
        %735 = vmatpush1.msra.mxu0 0.0
        %736 = vmatprep.subr.mxu0 0.0
        %737 = vmatpush1.msra.mxu0 0.0
        %738 = vmatprep.subr.mxu0 0.0
        %739 = vmatpush1.msra.mxu0 0.0
        %740 = vmatprep.subr.mxu0 0.0
        %741 = vmatpush1.msra.mxu0 0.0
        %742 = vmatprep.subr.mxu0 %v568
        %743 = vmatpush1.msra.mxu0 %v565
        %744 = vmatprep.subr.mxu0 %v235
        %745 = vmatpush1.msra.mxu0 %v234
        %746 = vmatprep.subr.mxu0 %v229
        %747 = vmatpush1.msra.mxu0 %v228
        %748 = vmatprep.subr.mxu0 %v223
        %749 = vmatpush1.msra.mxu0 %v222
        %750 = vmatprep.subr.mxu0 %v217
        %751 = vmatpush1.msra.mxu0 %v216
        %752 = vmatprep.subr.mxu0 %v211
        %753 = vmatpush1.msra.mxu0 %v210
        %754 = vmatprep.subr.mxu0 %v205
        %755 = vmatpush1.msra.mxu0 %v204
        %756 = vmatprep.subr.mxu0 0.0
        %757 = vmatpush2.msra.mxu0 0.0
        %758 = vmatprep.subr.mxu0 0.0
        %759 = vmatpush2.msra.mxu0 0.0
        %760 = vmatprep.subr.mxu0 0.0
        %761 = vmatpush2.msra.mxu0 0.0
        %762 = vmatprep.subr.mxu0 0.0
        %763 = vmatpush2.msra.mxu0 0.0
        %764 = vmatprep.subr.mxu0 0.0
        %765 = vmatpush2.msra.mxu0 0.0
        %766 = vmatprep.subr.mxu0 0.0
        %767 = vmatpush2.msra.mxu0 0.0
        %768 = vmatprep.subr.mxu0 0.0
        %769 = vmatpush2.msra.mxu0 0.0
        %770 = vmatprep.subr.mxu0 0.0
        %771 = vmatpush2.msra.mxu0 0.0
        %772 = vmatprep.subr.mxu0 0.0
        %773 = vmatpush2.msra.mxu0 0.0
        %774 = vmatprep.subr.mxu0 0.0
        %775 = vmatpush2.msra.mxu0 0.0
        %776 = vmatprep.subr.mxu0 0.0
        %777 = vmatpush2.msra.mxu0 0.0
        %778 = vmatprep.subr.mxu0 0.0
        %779 = vmatpush2.msra.mxu0 0.0
        %780 = vmatprep.subr.mxu0 0.0
        %781 = vmatpush2.msra.mxu0 0.0
        %782 = vmatprep.subr.mxu0 0.0
        %783 = vmatpush2.msra.mxu0 0.0
        %784 = vmatprep.subr.mxu0 0.0
        %785 = vmatpush2.msra.mxu0 0.0
        %786 = vmatprep.subr.mxu0 0.0
        %787 = vmatpush2.msra.mxu0 0.0
        %788 = vmatprep.mubr.f32.mxu0 0.0
        %789 = vmatmul.mubr.f32.gmra.mxu0 %v547
        %v790 = vpop.f32.mrf.mxu0
        %v791 = vadd.f32 %v536, %v790
        %v792 = vpop.f32.mrf.mxu0
        %v793 = vadd.f32 %v538, %v792
        %794 = vmatprep.mubr.f32.mxu0 0.0
        %795 = vmatmul.mubr.f32.gmra.mxu0 %v550
        %v796 = vpop.f32.mrf.mxu0
        %v797 = vadd.f32 %v542, %v796
        %v798 = vpop.f32.mrf.mxu0
        %v799 = vadd.f32 %v544, %v798
        %800 = vdwg.mxu0
        %s801 = sadd.s32 %s196, 2
        %s802 = scalar_lea.vmem %s193, %s801
        %v803 = vld [vmem:[%s802] sm:$0xff]
        %v804 = vld [vmem:[%s802 + $0x8] sm:$0xff]
        %s805 = scalar_lea.vmem [#allocation2], 672
        %v806 = vld [vmem:[%s805] sm:$0xff]
        %v807 = vld [vmem:[%s805 + $0x8] sm:$0xff]
        %v808 = vld [vmem:[%s805 + $0x10] sm:$0xff]
        %v809 = vld [vmem:[%s805 + $0x18] sm:$0xff]
        %v810 = vld [vmem:[%s805 + $0x20] sm:$0xff]
        %v811 = vld [vmem:[%s805 + $0x28] sm:$0xff]
        %v812 = vld [vmem:[%s805 + $0x30] sm:$0xff]
        %v813 = vld [vmem:[%s805 + $0x38] sm:$0xff]
        %v814 = vld [vmem:[%s805 + $0x40] sm:$0xff]
        %v815 = vld [vmem:[%s805 + $0x48] sm:$0xff]
        %v816 = vld [vmem:[%s805 + $0x50] sm:$0xff]
        %v817 = vld [vmem:[%s805 + $0x58] sm:$0xff]
        %v818 = vld [vmem:[%s805 + $0x60] sm:$0xff]
        %v819 = vld [vmem:[%s805 + $0x68] sm:$0xff]
        %v820 = vld [vmem:[%s805 + $0x70] sm:$0xff]
        %v821 = vld [vmem:[%s805 + $0x78] sm:$0xff]
        %v822 = vld [vmem:[%s805 + $0x80] sm:$0xff]
        %v823 = vld [vmem:[%s805 + $0x88] sm:$0xff]
        %v824 = vld [vmem:[%s805 + $0x90] sm:$0xff]
        %v825 = vld [vmem:[%s805 + $0x98] sm:$0xff]
        %v826 = vld [vmem:[%s805 + $0xa0] sm:$0xff]
        %v827 = vld [vmem:[%s805 + $0xa8] sm:$0xff]
        %v828 = vld [vmem:[%s805 + $0xb0] sm:$0xff]
        %v829 = vld [vmem:[%s805 + $0xb8] sm:$0xff]
        %v830 = vld [vmem:[%s805 + $0xc0] sm:$0xff]
        %v831 = vld [vmem:[%s805 + $0xc8] sm:$0xff]
        %v832 = vld [vmem:[%s805 + $0xd0] sm:$0xff]
        %v833 = vld [vmem:[%s805 + $0xd8] sm:$0xff]
        %v834 = vld [vmem:[%s805 + $0xe0] sm:$0xff]
        %v835 = vld [vmem:[%s805 + $0xe8] sm:$0xff]
        %v836 = vld [vmem:[%s805 + $0xf0] sm:$0xff]
        %v837 = vld [vmem:[%s805 + $0xf8] sm:$0xff]
        %v838 = vld [vmem:[%s805 + $0x100] sm:$0xff]
        %v839 = vld [vmem:[%s805 + $0x108] sm:$0xff]
        %v840 = vld [vmem:[%s805 + $0x110] sm:$0xff]
        %v841 = vld [vmem:[%s805 + $0x118] sm:$0xff]
        %v842 = vld [vmem:[%s805 + $0x120] sm:$0x3f]
        %v843 = vld [vmem:[%s805 + $0x128] sm:$0x3f]
        %v844 = vld [vmem:[%s805 + $0x130] sm:$0x3f]
        %v845 = vld [vmem:[%s805 + $0x138] sm:$0x3f]
        %v846 = vld [vmem:[%s805 + $0x140] sm:$0x3f]
        %v847 = vld [vmem:[%s805 + $0x148] sm:$0x3f]
        %v849 = vsel %vm289, %v803, 0
        %v852 = vsel %vm289, %v804, 0
        %v855 = vsel %vm296, %v842, 0
        %v858 = vsel %vm296, %v843, 0
        %v861 = vsel %vm296, %v844, 0
        %v864 = vsel %vm296, %v845, 0
        %v867 = vsel %vm296, %v846, 0
        %v870 = vsel %vm296, %v847, 0
        %872 = vmatprep.subr.mxu0 0.0
        %873 = vmatpush1.msra.mxu0 0.0
        %874 = vmatprep.subr.mxu0 0.0
        %875 = vmatpush1.msra.mxu0 0.0
        %876 = vmatprep.subr.mxu0 0.0
        %877 = vmatpush1.msra.mxu0 0.0
        %878 = vmatprep.subr.mxu0 0.0
        %879 = vmatpush1.msra.mxu0 0.0
        %880 = vmatprep.subr.mxu0 0.0
        %881 = vmatpush1.msra.mxu0 0.0
        %882 = vmatprep.subr.mxu0 0.0
        %883 = vmatpush1.msra.mxu0 0.0
        %884 = vmatprep.subr.mxu0 0.0
        %885 = vmatpush1.msra.mxu0 0.0
        %886 = vmatprep.subr.mxu0 0.0
        %887 = vmatpush1.msra.mxu0 0.0
        %888 = vmatprep.subr.mxu0 0.0
        %889 = vmatpush1.msra.mxu0 0.0
        %890 = vmatprep.subr.mxu0 %v858
        %891 = vmatpush1.msra.mxu0 %v855
        %892 = vmatprep.subr.mxu0 %v837
        %893 = vmatpush1.msra.mxu0 %v836
        %894 = vmatprep.subr.mxu0 %v831
        %895 = vmatpush1.msra.mxu0 %v830
        %896 = vmatprep.subr.mxu0 %v825
        %897 = vmatpush1.msra.mxu0 %v824
        %898 = vmatprep.subr.mxu0 %v819
        %899 = vmatpush1.msra.mxu0 %v818
        %900 = vmatprep.subr.mxu0 %v813
        %901 = vmatpush1.msra.mxu0 %v812
        %902 = vmatprep.subr.mxu0 %v807
        %903 = vmatpush1.msra.mxu0 %v806
        %904 = vmatprep.subr.mxu0 0.0
        %905 = vmatpush2.msra.mxu0 0.0
        %906 = vmatprep.subr.mxu0 0.0
        %907 = vmatpush2.msra.mxu0 0.0
        %908 = vmatprep.subr.mxu0 0.0
        %909 = vmatpush2.msra.mxu0 0.0
        %910 = vmatprep.subr.mxu0 0.0
        %911 = vmatpush2.msra.mxu0 0.0
        %912 = vmatprep.subr.mxu0 0.0
        %913 = vmatpush2.msra.mxu0 0.0
        %914 = vmatprep.subr.mxu0 0.0
        %915 = vmatpush2.msra.mxu0 0.0
        %916 = vmatprep.subr.mxu0 0.0
        %917 = vmatpush2.msra.mxu0 0.0
        %918 = vmatprep.subr.mxu0 0.0
        %919 = vmatpush2.msra.mxu0 0.0
        %920 = vmatprep.subr.mxu0 0.0
        %921 = vmatpush2.msra.mxu0 0.0
        %922 = vmatprep.subr.mxu0 0.0
        %923 = vmatpush2.msra.mxu0 0.0
        %924 = vmatprep.subr.mxu0 0.0
        %925 = vmatpush2.msra.mxu0 0.0
        %926 = vmatprep.subr.mxu0 0.0
        %927 = vmatpush2.msra.mxu0 0.0
        %928 = vmatprep.subr.mxu0 0.0
        %929 = vmatpush2.msra.mxu0 0.0
        %930 = vmatprep.subr.mxu0 0.0
        %931 = vmatpush2.msra.mxu0 0.0
        %932 = vmatprep.subr.mxu0 0.0
        %933 = vmatpush2.msra.mxu0 0.0
        %934 = vmatprep.subr.mxu0 0.0
        %935 = vmatpush2.msra.mxu0 0.0
        %936 = vmatprep.mubr.f32.mxu0 0.0
        %937 = vmatmul.mubr.f32.gmra.mxu0 %v849
        %v938 = vpop.f32.mrf.mxu0
        %v939 = vadd.f32 0.0, %v938
        %v940 = vpop.f32.mrf.mxu0
        %v941 = vadd.f32 0.0, %v940
        %942 = vmatprep.mubr.f32.mxu0 0.0
        %943 = vmatmul.mubr.f32.gmra.mxu0 %v852
        %v944 = vpop.f32.mrf.mxu0
        %v945 = vadd.f32 0.0, %v944
        %v946 = vpop.f32.mrf.mxu0
        %v947 = vadd.f32 0.0, %v946
        %948 = vdwg.mxu0
        %949 = vmatprep.subr.mxu0 0.0
        %950 = vmatpush1.msra.mxu0 0.0
        %951 = vmatprep.subr.mxu0 0.0
        %952 = vmatpush1.msra.mxu0 0.0
        %953 = vmatprep.subr.mxu0 0.0
        %954 = vmatpush1.msra.mxu0 0.0
        %955 = vmatprep.subr.mxu0 0.0
        %956 = vmatpush1.msra.mxu0 0.0
        %957 = vmatprep.subr.mxu0 0.0
        %958 = vmatpush1.msra.mxu0 0.0
        %959 = vmatprep.subr.mxu0 0.0
        %960 = vmatpush1.msra.mxu0 0.0
        %961 = vmatprep.subr.mxu0 0.0
        %962 = vmatpush1.msra.mxu0 0.0
        %963 = vmatprep.subr.mxu0 0.0
        %964 = vmatpush1.msra.mxu0 0.0
        %965 = vmatprep.subr.mxu0 0.0
        %966 = vmatpush1.msra.mxu0 0.0
        %967 = vmatprep.subr.mxu0 %v864
        %968 = vmatpush1.msra.mxu0 %v861
        %969 = vmatprep.subr.mxu0 %v839
        %970 = vmatpush1.msra.mxu0 %v838
        %971 = vmatprep.subr.mxu0 %v833
        %972 = vmatpush1.msra.mxu0 %v832
        %973 = vmatprep.subr.mxu0 %v827
        %974 = vmatpush1.msra.mxu0 %v826
        %975 = vmatprep.subr.mxu0 %v821
        %976 = vmatpush1.msra.mxu0 %v820
        %977 = vmatprep.subr.mxu0 %v815
        %978 = vmatpush1.msra.mxu0 %v814
        %979 = vmatprep.subr.mxu0 %v809
        %980 = vmatpush1.msra.mxu0 %v808
        %981 = vmatprep.subr.mxu0 0.0
        %982 = vmatpush2.msra.mxu0 0.0
        %983 = vmatprep.subr.mxu0 0.0
        %984 = vmatpush2.msra.mxu0 0.0
        %985 = vmatprep.subr.mxu0 0.0
        %986 = vmatpush2.msra.mxu0 0.0
        %987 = vmatprep.subr.mxu0 0.0
        %988 = vmatpush2.msra.mxu0 0.0
        %989 = vmatprep.subr.mxu0 0.0
        %990 = vmatpush2.msra.mxu0 0.0
        %991 = vmatprep.subr.mxu0 0.0
        %992 = vmatpush2.msra.mxu0 0.0
        %993 = vmatprep.subr.mxu0 0.0
        %994 = vmatpush2.msra.mxu0 0.0
        %995 = vmatprep.subr.mxu0 0.0
        %996 = vmatpush2.msra.mxu0 0.0
        %997 = vmatprep.subr.mxu0 0.0
        %998 = vmatpush2.msra.mxu0 0.0
        %999 = vmatprep.subr.mxu0 0.0
        %1000 = vmatpush2.msra.mxu0 0.0
        %1001 = vmatprep.subr.mxu0 0.0
        %1002 = vmatpush2.msra.mxu0 0.0
        %1003 = vmatprep.subr.mxu0 0.0
        %1004 = vmatpush2.msra.mxu0 0.0
        %1005 = vmatprep.subr.mxu0 0.0
        %1006 = vmatpush2.msra.mxu0 0.0
        %1007 = vmatprep.subr.mxu0 0.0
        %1008 = vmatpush2.msra.mxu0 0.0
        %1009 = vmatprep.subr.mxu0 0.0
        %1010 = vmatpush2.msra.mxu0 0.0
        %1011 = vmatprep.subr.mxu0 0.0
        %1012 = vmatpush2.msra.mxu0 0.0
        %1013 = vmatprep.mubr.f32.mxu0 0.0
        %1014 = vmatmul.mubr.f32.gmra.mxu0 %v849
        %v1015 = vpop.f32.mrf.mxu0
        %v1016 = vadd.f32 0.0, %v1015
        %v1017 = vpop.f32.mrf.mxu0
        %v1018 = vadd.f32 0.0, %v1017
        %1019 = vmatprep.mubr.f32.mxu0 0.0
        %1020 = vmatmul.mubr.f32.gmra.mxu0 %v852
        %v1021 = vpop.f32.mrf.mxu0
        %v1022 = vadd.f32 0.0, %v1021
        %v1023 = vpop.f32.mrf.mxu0
        %v1024 = vadd.f32 0.0, %v1023
        %1025 = vdwg.mxu0
        %1026 = vmatprep.subr.mxu0 0.0
        %1027 = vmatpush1.msra.mxu0 0.0
        %1028 = vmatprep.subr.mxu0 0.0
        %1029 = vmatpush1.msra.mxu0 0.0
        %1030 = vmatprep.subr.mxu0 0.0
        %1031 = vmatpush1.msra.mxu0 0.0
        %1032 = vmatprep.subr.mxu0 0.0
        %1033 = vmatpush1.msra.mxu0 0.0
        %1034 = vmatprep.subr.mxu0 0.0
        %1035 = vmatpush1.msra.mxu0 0.0
        %1036 = vmatprep.subr.mxu0 0.0
        %1037 = vmatpush1.msra.mxu0 0.0
        %1038 = vmatprep.subr.mxu0 0.0
        %1039 = vmatpush1.msra.mxu0 0.0
        %1040 = vmatprep.subr.mxu0 0.0
        %1041 = vmatpush1.msra.mxu0 0.0
        %1042 = vmatprep.subr.mxu0 0.0
        %1043 = vmatpush1.msra.mxu0 0.0
        %1044 = vmatprep.subr.mxu0 %v870
        %1045 = vmatpush1.msra.mxu0 %v867
        %1046 = vmatprep.subr.mxu0 %v841
        %1047 = vmatpush1.msra.mxu0 %v840
        %1048 = vmatprep.subr.mxu0 %v835
        %1049 = vmatpush1.msra.mxu0 %v834
        %1050 = vmatprep.subr.mxu0 %v829
        %1051 = vmatpush1.msra.mxu0 %v828
        %1052 = vmatprep.subr.mxu0 %v823
        %1053 = vmatpush1.msra.mxu0 %v822
        %1054 = vmatprep.subr.mxu0 %v817
        %1055 = vmatpush1.msra.mxu0 %v816
        %1056 = vmatprep.subr.mxu0 %v811
        %1057 = vmatpush1.msra.mxu0 %v810
        %1058 = vmatprep.subr.mxu0 0.0
        %1059 = vmatpush2.msra.mxu0 0.0
        %1060 = vmatprep.subr.mxu0 0.0
        %1061 = vmatpush2.msra.mxu0 0.0
        %1062 = vmatprep.subr.mxu0 0.0
        %1063 = vmatpush2.msra.mxu0 0.0
        %1064 = vmatprep.subr.mxu0 0.0
        %1065 = vmatpush2.msra.mxu0 0.0
        %1066 = vmatprep.subr.mxu0 0.0
        %1067 = vmatpush2.msra.mxu0 0.0
        %1068 = vmatprep.subr.mxu0 0.0
        %1069 = vmatpush2.msra.mxu0 0.0
        %1070 = vmatprep.subr.mxu0 0.0
        %1071 = vmatpush2.msra.mxu0 0.0
        %1072 = vmatprep.subr.mxu0 0.0
        %1073 = vmatpush2.msra.mxu0 0.0
        %1074 = vmatprep.subr.mxu0 0.0
        %1075 = vmatpush2.msra.mxu0 0.0
        %1076 = vmatprep.subr.mxu0 0.0
        %1077 = vmatpush2.msra.mxu0 0.0
        %1078 = vmatprep.subr.mxu0 0.0
        %1079 = vmatpush2.msra.mxu0 0.0
        %1080 = vmatprep.subr.mxu0 0.0
        %1081 = vmatpush2.msra.mxu0 0.0
        %1082 = vmatprep.subr.mxu0 0.0
        %1083 = vmatpush2.msra.mxu0 0.0
        %1084 = vmatprep.subr.mxu0 0.0
        %1085 = vmatpush2.msra.mxu0 0.0
        %1086 = vmatprep.subr.mxu0 0.0
        %1087 = vmatpush2.msra.mxu0 0.0
        %1088 = vmatprep.subr.mxu0 0.0
        %1089 = vmatpush2.msra.mxu0 0.0
        %1090 = vmatprep.mubr.f32.mxu0 0.0
        %1091 = vmatmul.mubr.f32.gmra.mxu0 %v849
        %v1092 = vpop.f32.mrf.mxu0
        %v1093 = vadd.f32 0.0, %v1092
        %v1094 = vpop.f32.mrf.mxu0
        %v1095 = vadd.f32 0.0, %v1094
        %1096 = vmatprep.mubr.f32.mxu0 0.0
        %1097 = vmatmul.mubr.f32.gmra.mxu0 %v852
        %v1098 = vpop.f32.mrf.mxu0
        %v1099 = vadd.f32 0.0, %v1098
        %v1100 = vpop.f32.mrf.mxu0
        %v1101 = vadd.f32 0.0, %v1100
        %1102 = vdwg.mxu0
        %v1103 = vadd.f32 %v637, %v939
        %v1104 = vadd.f32 %v639, %v941
        %v1105 = vadd.f32 %v714, %v1016
        %v1106 = vadd.f32 %v716, %v1018
        %v1107 = vadd.f32 %v791, %v1093
        %v1108 = vadd.f32 %v793, %v1095
        %v1109 = vadd.f32 %v643, %v945
        %v1110 = vadd.f32 %v645, %v947
        %v1111 = vadd.f32 %v720, %v1022
        %v1112 = vadd.f32 %v722, %v1024
        %v1113 = vadd.f32 %v797, %v1099
        %v1114 = vadd.f32 %v799, %v1101
        %1115 = vst [vmem:[%s184] sm:$0xff] %v1103
        %1116 = vst [vmem:[%s184 + $0x8] sm:$0xff] %v1104
        %1117 = vst [vmem:[%s184 + $0x10] sm:$0xff] %v1105
        %1118 = vst [vmem:[%s184 + $0x18] sm:$0xff] %v1106
        %1119 = vst [vmem:[%s184 + $0x20] sm:$0xff] %v1107
        %1120 = vst [vmem:[%s184 + $0x28] sm:$0xff] %v1108
        %1121 = vst [vmem:[%s184 + $0x30] sm:$0xff] %v1109
        %1122 = vst [vmem:[%s184 + $0x38] sm:$0xff] %v1110
        %1123 = vst [vmem:[%s184 + $0x40] sm:$0xff] %v1111
        %1124 = vst [vmem:[%s184 + $0x48] sm:$0xff] %v1112
        %1125 = vst [vmem:[%s184 + $0x50] sm:$0xff] %v1113
        %1126 = vst [vmem:[%s184 + $0x58] sm:$0xff] %v1114
        %s1127 = sand.u32 %s97, 1
        %s1128 = scalar_lea.sflag [#allocation4], %s1127
        %s1129 = sand.u32 %s97, 1
        %s1130 = smul.addr %s1129, 96
        %s1131 = scalar_lea.vmem [#allocation5], %s1130
        // Predicated region
        $region33: #{tpu_custom_call.1} parent=27 // pred_check
          %p1132 = pneg %p107
        $region34: #{tpu_custom_call.1} parent=27 // pred_check_branch
          %1134 = sbr.rel (%p1132) target = $region36
        $region35: #{tpu_custom_call.1} parent=27 // pred_region
          %s1135 = smul.u32 2, %s24
          %s1136 = smul.u32 6, %s23
          %s1138 = ssub.s32 1536, 1536
          %1139 = vsyncadd %s1128, %s1138
          %s1140 = smul.addr %s1135, 6
          %s1141 = sadd.s32 %s1136, %s1140
          %s1142 = smul.addr %s22, 12
          %s1143 = sadd.s32 %s1141, %s1142
          %s1144 = smul.addr %s1143, 128
          %s1145 = scalar_lea.hbm %s2, %s1144
          %s1146 = sshll.u32 %s1131, 4
          %s1147 = int_to_ptr.vmem [resolvable:$true] %s1146
          %1152 = dma.vmem_to_hbm [thread:$0]  %s1147, 1536, %s1145, %s1128, 768, 768, 48
        $region36: #{tpu_custom_call.1} parent=27 // pred_fallthru
          _
      $region28: #{tpu_custom_call.1} parent=5 // pred_fallthru
        _
      %p1153 = scmp.le.s32.totalorder 2, %s12
      // Predicated region
      $region37: #{tpu_custom_call.1} parent=5 // pred_check
        %p1154 = pneg %p1153
      $region38: #{tpu_custom_call.1} parent=5 // pred_check_branch
        %1156 = sbr.rel (%p1154) target = $region40
      $region39: #{tpu_custom_call.1} parent=5 // pred_region
        %s1157 = ssub.s32 %s12, 2
        // Predicated region
        $region41: #{tpu_custom_call.1} parent=39 // pred_check
          %p1158 = pneg %p113
        $region42: #{tpu_custom_call.1} parent=39 // pred_check_branch
          %1160 = sbr.rel (%p1158) target = $region44
        $region43: #{tpu_custom_call.1} parent=39 // pred_region
          %s1161 = sand.u32 %s98, 1
          %s1162 = scalar_lea.sflag [#allocation4], %s1161
          %s1163 = sand.u32 %s98, 1
          %s1164 = smul.addr %s1163, 96
          %s1165 = scalar_lea.vmem [#allocation5], %s1164
          %1166 = dma.done %s1162, 1536
        $region44: #{tpu_custom_call.1} parent=39 // pred_fallthru
          _
      $region40: #{tpu_custom_call.1} parent=5 // pred_fallthru
        _
    $region6: #{tpu_custom_call.1} parent=1 // loop_footer
      %s16 = sadd.s32 1, %s12
    $region7: #{tpu_custom_call.1} parent=1 // loop_footer_branch
      %11 = sbr.rel target = $region3
    $region8: #{tpu_custom_call.1} parent=1 // loop_exit
      _
    %1167 = vsyncpa [#allocation3], 1
    %s1168 = scalar_lea.sflag [#allocation3], 1
    %1169 = vsyncpa %s1168, 1
    %1170 = vsyncpa [#allocation4], 1
    %s1171 = scalar_lea.sflag [#allocation4], 1
    %1172 = vsyncpa %s1171, 1

</llo_original>
